<compile_context>
chip_gen: v6e
topology: v6e:2x2x1
jax: 0.10.0
libtpu: 0.0.40
codegen_flags: <defaults>
</compile_context>

<pallas_src>
import jax
import jax.numpy as jnp
from jax.experimental import pallas as pl
from jax.experimental.pallas import tpu as pltpu

IN_DIM, H1, H2, OUT_DIM = 4, 32, 16, 2


def actor_kernel(x_ref, w1_ref, b1_ref, w2_ref, b2_ref, w3d_ref, b3d_ref, o_ref):
    # x tile: [IN_DIM, bb]  (batch on the lane axis); compute in f32.
    x = x_ref[...].astype(jnp.float32)

    # Linear(4, 32) + ReLU  ->  [H1, bb]
    h1 = jnp.dot(w1_ref[...], x, preferred_element_type=jnp.float32) + b1_ref[...]
    h1 = jnp.maximum(h1, 0.0)

    # Linear(32, 16) + ReLU ->  [H2, bb]
    h2 = jnp.dot(w2_ref[...], h1, preferred_element_type=jnp.float32) + b2_ref[...]
    h2 = jnp.maximum(h2, 0.0)

    # 2-class softmax == sigmoid of the logit difference (exact; rows sum to 1).
    # w3d = w3[0]-w3[1], b3d = b3[0]-b3[1] are folded in the wrapper -> [1, bb].
    z = jnp.dot(w3d_ref[...], h2, preferred_element_type=jnp.float32) + b3d_ref[...]
    p0 = 1.0 / (1.0 + jnp.exp(-z))   # exp(-z)->inf gives p0->0 cleanly; no NaN path
    o_ref[0:1, :] = p0.astype(o_ref.dtype)
    o_ref[1:2, :] = (1.0 - p0).astype(o_ref.dtype)


def _choose_tile(B, block_b):
    """Pick the batch tile (in lanes, multiple of 128) and padded batch size."""
    lanes = 128 * pl.cdiv(B, 128)
    bb = min(block_b, lanes)
    # Keep >= ~8 grid steps when the batch allows it: 2 TCs (v7x) x >=4 steps each
    # preserves megacore sharding and DMA/compute double-buffering.
    if lanes >= 8 * 128:
        bb = min(bb, max(128, (lanes // 8) // 128 * 128))
    padded_b = bb * pl.cdiv(lanes, bb)
    return bb, padded_b


def actor_forward(x, params, *, block_b=65536, out_dtype=jnp.float32):
    """Actor forward.  x: [B, IN_DIM] (f32 or bf16) -> probs [B, OUT_DIM].

    params are PyTorch-layout: W1 [32,4], b1 [32,1], W2 [16,32], b2 [16,1],
    W3 [2,16], b3 [2,1].  Pass x as bf16 to halve the dominant HBM stream.
    """
    w1, b1, w2, b2, w3, b3 = params
    B = x.shape[0]
    assert x.shape[1] == IN_DIM

    # Fold the 2-class softmax into a sigmoid of the logit difference.
    w3d = (w3[0:1, :] - w3[1:2, :]).astype(jnp.float32)   # [1, H2]
    b3d = (b3[0:1, :] - b3[1:2, :]).astype(jnp.float32)   # [1, 1]

    bb, padded_b = _choose_tile(B, block_b)

    # Batch on the lane axis; pad only if needed (no zeros+scatter extra HBM pass).
    xT = x.T
    if padded_b != B:
        xT = jnp.pad(xT, ((0, 0), (0, padded_b - B)))

    isz = lambda a: jnp.dtype(a.dtype).itemsize
    param_bytes = sum(int(p.size) * isz(p) for p in (w1, b1, w2, b2, w3d, b3d))
    cost = pl.CostEstimate(
        flops=2 * padded_b * (IN_DIM * H1 + H1 * H2 + H2) + padded_b * (H1 + H2 + 3),
        transcendentals=padded_b,
        bytes_accessed=int(xT.size) * isz(xT)
        + OUT_DIM * padded_b * jnp.dtype(out_dtype).itemsize
        + param_bytes,
    )

    # Double-buffered x/out tiles; only raise the scoped-VMEM limit if the caller
    # pushes very large tiles (v5e's default scoped VMEM is 16 MiB).
    tile_bytes = 2 * bb * (IN_DIM * isz(xT) + OUT_DIM * jnp.dtype(out_dtype).itemsize)
    vmem_limit = None
    if tile_bytes > 12 * 1024 * 1024:
        vmem_limit = min(tile_bytes + (8 << 20), 128 << 20)

    const = lambda shape: pl.BlockSpec(shape, lambda i: (0, 0))

    outT = pl.pallas_call(
        actor_kernel,
        out_shape=jax.ShapeDtypeStruct((OUT_DIM, padded_b), out_dtype),
        grid=(padded_b // bb,),
        in_specs=[
            pl.BlockSpec((IN_DIM, bb), lambda i: (0, i)),   # x tile follows the grid
            const((H1, IN_DIM)), const((H1, 1)),            # weights stay VMEM-resident
            const((H2, H1)), const((H2, 1)),
            const((1, H2)), const((1, 1)),
        ],
        out_specs=pl.BlockSpec((OUT_DIM, bb), lambda i: (0, i)),
        compiler_params=pltpu.CompilerParams(
            dimension_semantics=("parallel",),               # batch shards across TCs on v7x
            vmem_limit_bytes=vmem_limit,
        ),
        cost_estimate=cost,
    )(xT, w1, b1, w2, b2, w3d, b3d)

    # Consumers that accept a [OUT_DIM, B] layout can take outT[:, :B] directly
    # and skip this lane-sparse transpose.
    return outT[:, :B].T


def actor_reference(x, params):
    """Plain-XLA reference (also the preferred path for tiny batches)."""
    w1, b1, w2, b2, w3, b3 = params
    h1 = jnp.maximum(x.astype(jnp.float32) @ w1.T + b1.T, 0.0)
    h2 = jnp.maximum(h1 @ w2.T + b2.T, 0.0)
    logits = h2 @ w3.T + b3.T
    return jax.nn.softmax(logits, axis=-1)


def init_params(key):
    """PyTorch Linear default init: U(-1/sqrt(fan_in), 1/sqrt(fan_in)); W is [out, in]."""
    def linear(key, fan_in, fan_out):
        kw, kb = jax.random.split(key)
        bound = 1.0 / jnp.sqrt(fan_in)
        w = jax.random.uniform(kw, (fan_out, fan_in), jnp.float32, -bound, bound)
        b = jax.random.uniform(kb, (fan_out, 1), jnp.float32, -bound, bound)
        return w, b

    k1, k2, k3 = jax.random.split(key, 3)
    w1, b1 = linear(k1, IN_DIM, H1)
    w2, b2 = linear(k2, H1, H2)
    w3, b3 = linear(k3, H2, OUT_DIM)
    return w1, b1, w2, b2, w3, b3


if __name__ == "__main__":
    key = jax.random.PRNGKey(0)
    k_params, k_x = jax.random.split(key)
    params = init_params(k_params)

    # Small f32 check (batch=8).
    B = 8
    x = jax.random.normal(k_x, (B, IN_DIM), dtype=jnp.float32)
    out = jax.block_until_ready(actor_forward(x, params))
    assert out.shape == (B, OUT_DIM)
    assert jnp.allclose(jnp.sum(out, axis=-1), 1.0, atol=1e-5)
    ref = actor_reference(x, params)
    assert jnp.allclose(out, ref, atol=1e-5, rtol=1e-5)

    # Non-multiple-of-128 batch with bf16 input (exercises padding + bf16 I/O path).
    B2 = 300
    x2 = jax.random.normal(jax.random.PRNGKey(1), (B2, IN_DIM), dtype=jnp.float32)
    x2_bf16 = x2.astype(jnp.bfloat16)
    out2 = jax.block_until_ready(actor_forward(x2_bf16, params))
    ref2 = actor_reference(x2_bf16.astype(jnp.float32), params)
    assert out2.shape == (B2, OUT_DIM)
    assert jnp.allclose(jnp.sum(out2, axis=-1), 1.0, atol=1e-5)
    assert jnp.allclose(out2, ref2, atol=1e-3, rtol=1e-3)

    print("KERNEL_OK")
</pallas_src>

<mosaic_0001>
module attributes {stable_mosaic.version = 11 : i64} {
  func.func @actor_kernel(%arg0: i32, %arg1: memref<4x128xf32, #tpu.memory_space<vmem>>, %arg2: memref<32x4xf32, #tpu.memory_space<vmem>>, %arg3: memref<32x1xf32, #tpu.memory_space<vmem>>, %arg4: memref<16x32xf32, #tpu.memory_space<vmem>>, %arg5: memref<16x1xf32, #tpu.memory_space<vmem>>, %arg6: memref<1x16xf32, #tpu.memory_space<vmem>>, %arg7: memref<1x1xf32, #tpu.memory_space<vmem>>, %arg8: memref<2x128xf32, #tpu.memory_space<vmem>>) attributes {dimension_semantics = [#tpu.dimension_semantics<parallel>], iteration_bounds = array<i64: 1>, scalar_prefetch = 0 : i64, scratch_operands = 0 : i64, tpu.core_type = #tpu.core_type<tc>, window_params = [{transform_indices = @transform_0, window_bounds = array<i64: 4, 128>}, {pipeline_mode = #tpu.pipeline_mode<synchronous>, transform_indices = @transform_1, window_bounds = array<i64: 32, 4>}, {pipeline_mode = #tpu.pipeline_mode<synchronous>, transform_indices = @transform_2, window_bounds = array<i64: 32, 1>}, {pipeline_mode = #tpu.pipeline_mode<synchronous>, transform_indices = @transform_3, window_bounds = array<i64: 16, 32>}, {pipeline_mode = #tpu.pipeline_mode<synchronous>, transform_indices = @transform_4, window_bounds = array<i64: 16, 1>}, {pipeline_mode = #tpu.pipeline_mode<synchronous>, transform_indices = @transform_5, window_bounds = array<i64: 1, 16>}, {pipeline_mode = #tpu.pipeline_mode<synchronous>, transform_indices = @transform_6, window_bounds = array<i64: 1, 1>}, {transform_indices = @transform_7, window_bounds = array<i64: 2, 128>}]} {
    %c0 = arith.constant 0 : index
    %c0_0 = arith.constant 0 : index
    %0 = vector.load %arg1[%c0, %c0_0] : memref<4x128xf32, #tpu.memory_space<vmem>>, vector<4x128xf32>
    %c0_1 = arith.constant 0 : index
    %c0_2 = arith.constant 0 : index
    %1 = vector.load %arg2[%c0_1, %c0_2] : memref<32x4xf32, #tpu.memory_space<vmem>>, vector<32x4xf32>
    %cst = arith.constant dense<0.000000e+00> : vector<32x128xf32>
    %2 = tpu.matmul %1, %0, %cst {dimension_numbers = #tpu.dot_dimension_numbers<[1], [0], [0], [1], [0, 0, 1, 1], [], []>} : vector<32x4xf32>, vector<4x128xf32>, vector<32x128xf32> -> vector<32x128xf32>
    %c0_3 = arith.constant 0 : index
    %c0_4 = arith.constant 0 : index
    %3 = vector.load %arg3[%c0_3, %c0_4] : memref<32x1xf32, #tpu.memory_space<vmem>>, vector<32x1xf32>
    %4 = vector.broadcast %3 : vector<32x1xf32> to vector<32x128xf32>
    %5 = arith.addf %2, %4 : vector<32x128xf32>
    %cst_5 = arith.constant 0.000000e+00 : f32
    %6 = vector.broadcast %cst_5 : f32 to vector<32x128xf32>
    %7 = arith.maximumf %5, %6 : vector<32x128xf32>
    %c0_6 = arith.constant 0 : index
    %c0_7 = arith.constant 0 : index
    %8 = vector.load %arg4[%c0_6, %c0_7] : memref<16x32xf32, #tpu.memory_space<vmem>>, vector<16x32xf32>
    %cst_8 = arith.constant dense<0.000000e+00> : vector<16x128xf32>
    %9 = tpu.matmul %8, %7, %cst_8 {dimension_numbers = #tpu.dot_dimension_numbers<[1], [0], [0], [1], [0, 0, 1, 1], [], []>} : vector<16x32xf32>, vector<32x128xf32>, vector<16x128xf32> -> vector<16x128xf32>
    %c0_9 = arith.constant 0 : index
    %c0_10 = arith.constant 0 : index
    %10 = vector.load %arg5[%c0_9, %c0_10] : memref<16x1xf32, #tpu.memory_space<vmem>>, vector<16x1xf32>
    %11 = vector.broadcast %10 : vector<16x1xf32> to vector<16x128xf32>
    %12 = arith.addf %9, %11 : vector<16x128xf32>
    %cst_11 = arith.constant 0.000000e+00 : f32
    %13 = vector.broadcast %cst_11 : f32 to vector<16x128xf32>
    %14 = arith.maximumf %12, %13 : vector<16x128xf32>
    %c0_12 = arith.constant 0 : index
    %c0_13 = arith.constant 0 : index
    %15 = vector.load %arg6[%c0_12, %c0_13] : memref<1x16xf32, #tpu.memory_space<vmem>>, vector<1x16xf32>
    %cst_14 = arith.constant dense<0.000000e+00> : vector<1x128xf32>
    %16 = tpu.matmul %15, %14, %cst_14 {dimension_numbers = #tpu.dot_dimension_numbers<[1], [0], [0], [1], [0, 0, 1, 1], [], []>} : vector<1x16xf32>, vector<16x128xf32>, vector<1x128xf32> -> vector<1x128xf32>
    %c0_15 = arith.constant 0 : index
    %c0_16 = arith.constant 0 : index
    %17 = vector.load %arg7[%c0_15, %c0_16] : memref<1x1xf32, #tpu.memory_space<vmem>>, vector<1x1xf32>
    %18 = vector.broadcast %17 : vector<1x1xf32> to vector<1x128xf32>
    %19 = arith.addf %16, %18 : vector<1x128xf32>
    %cst_17 = arith.constant 0.000000e+00 : f32
    %20 = vector.broadcast %cst_17 : f32 to vector<1x128xf32>
    %21 = arith.subf %20, %19 : vector<1x128xf32>
    %22 = math.exp %21 : vector<1x128xf32>
    %cst_18 = arith.constant 1.000000e+00 : f32
    %23 = vector.broadcast %cst_18 : f32 to vector<1x128xf32>
    %24 = arith.addf %23, %22 : vector<1x128xf32>
    %cst_19 = arith.constant 1.000000e+00 : f32
    %25 = vector.broadcast %cst_19 : f32 to vector<1x128xf32>
    %26 = arith.divf %25, %24 : vector<1x128xf32>
    %c0_20 = arith.constant 0 : index
    %c0_21 = arith.constant 0 : index
    %27 = vector.load %arg8[%c0_20, %c0_21] : memref<2x128xf32, #tpu.memory_space<vmem>>, vector<1x128xf32>
    tpu.vector_store %arg8[%c0_20, %c0_21], %26 {strides = array<i32>} : memref<2x128xf32, #tpu.memory_space<vmem>>, vector<1x128xf32>,
    %cst_22 = arith.constant 1.000000e+00 : f32
    %28 = vector.broadcast %cst_22 : f32 to vector<1x128xf32>
    %29 = arith.subf %28, %26 : vector<1x128xf32>
    %c1 = arith.constant 1 : index
    %c0_23 = arith.constant 0 : index
    %30 = vector.load %arg8[%c1, %c0_23] : memref<2x128xf32, #tpu.memory_space<vmem>>, vector<1x128xf32>
    tpu.vector_store %arg8[%c1, %c0_23], %29 {strides = array<i32>} : memref<2x128xf32, #tpu.memory_space<vmem>>, vector<1x128xf32>,
    return
  }
  func.func @transform_0(%arg0: i32) -> (i32, i32) {
    %c0_i32 = arith.constant 0 : i32
    %c0_i32_0 = arith.constant 0 : i32
    return %c0_i32, %arg0 : i32, i32
  }
  func.func @transform_1(%arg0: i32) -> (i32, i32) {
    %c0_i32 = arith.constant 0 : i32
    %c0_i32_0 = arith.constant 0 : i32
    %c0_i32_1 = arith.constant 0 : i32
    return %c0_i32, %c0_i32_0 : i32, i32
  }
  func.func @transform_2(%arg0: i32) -> (i32, i32) {
    %c0_i32 = arith.constant 0 : i32
    %c0_i32_0 = arith.constant 0 : i32
    %c0_i32_1 = arith.constant 0 : i32
    return %c0_i32, %c0_i32_0 : i32, i32
  }
  func.func @transform_3(%arg0: i32) -> (i32, i32) {
    %c0_i32 = arith.constant 0 : i32
    %c0_i32_0 = arith.constant 0 : i32
    %c0_i32_1 = arith.constant 0 : i32
    return %c0_i32, %c0_i32_0 : i32, i32
  }
  func.func @transform_4(%arg0: i32) -> (i32, i32) {
    %c0_i32 = arith.constant 0 : i32
    %c0_i32_0 = arith.constant 0 : i32
    %c0_i32_1 = arith.constant 0 : i32
    return %c0_i32, %c0_i32_0 : i32, i32
  }
  func.func @transform_5(%arg0: i32) -> (i32, i32) {
    %c0_i32 = arith.constant 0 : i32
    %c0_i32_0 = arith.constant 0 : i32
    %c0_i32_1 = arith.constant 0 : i32
    return %c0_i32, %c0_i32_0 : i32, i32
  }
  func.func @transform_6(%arg0: i32) -> (i32, i32) {
    %c0_i32 = arith.constant 0 : i32
    %c0_i32_0 = arith.constant 0 : i32
    %c0_i32_1 = arith.constant 0 : i32
    return %c0_i32, %c0_i32_0 : i32, i32
  }
  func.func @transform_7(%arg0: i32) -> (i32, i32) {
    %c0_i32 = arith.constant 0 : i32
    %c0_i32_0 = arith.constant 0 : i32
    return %c0_i32, %arg0 : i32, i32
  }
}

</mosaic_0001>

<llo_original>
// kernel: tpu_custom_call.1
$region0: #{tpu_custom_call.1}
  #allocation0 [shape = 'u32[]', space=smem, size = 0x4, offset = 0x4, fixed_abs, tag = 'smem constant byte address 0x4 - core index']
  #allocation1 [shape = 'u32[144,128]{1,0:T(1,128)}', space=vmem, size = 0x12000, scoped, tag = 'internal scratch']
  #allocation2 [shape = 'f32[1,1]{1,0:T(1,128)S(1)}', space=vmem, size = 0x200, scoped, tag = 'scoped memory for tpu_custom_call.1']
  %s0 = inlined_call_operand.vmem [shape: f32[4,128], index: 0, kind: input, shape index: {}]
  %s1 = inlined_call_operand.vmem [shape: f32[32,4], index: 1, kind: input, shape index: {}]
  %s2 = inlined_call_operand.vmem [shape: f32[32,1], index: 2, kind: input, shape index: {}]
  %s3 = inlined_call_operand.vmem [shape: f32[16,32], index: 3, kind: input, shape index: {}]
  %s4 = inlined_call_operand.vmem [shape: f32[16,1], index: 4, kind: input, shape index: {}]
  %s5 = inlined_call_operand.vmem [shape: f32[1,16], index: 5, kind: input, shape index: {}]
  %s6 = inlined_call_operand.<no memory space> [shape: f32[1,1], index: 6, kind: input, shape index: {}]
  %s7 = inlined_call_operand.hbm [shape: f32[2,128], index: 7, kind: output, shape index: {}]
  %s8 = sld [smem:[#allocation0]]
  $region38: #{tpu_custom_call.1} parent=0
    _
  %s10 = ssub.s32 1, %s8
  %s11 = scalar_select 0, %s10, %s8
  %v12 = vstv %s6
  %13 = vst [vmem:[#allocation2] sm:$0x1] %v12
  $region1: #{tpu_custom_call.1} parent=0
    #allocation3 [shape = 'u8[1024]{0}', space=vmem, size = 0x400, scoped, tag = 'output window, operand 0, single buffered']
    #allocation4 [shape = 's32[1]{0}', space=sflag, size = 0x4, scoped, tag = 'scoped memory for tpu_custom_call.1']
    %14 = vsyncpa [#allocation4], 0
    // Predicated region
    $region2: #{tpu_custom_call.1} parent=1 // pred_check
      _
    $region3: #{tpu_custom_call.1} parent=1 // pred_check_branch
      %16 = sbr.rel (0) target = $region5
    $region4: #{tpu_custom_call.1} parent=1 // pred_region
      _
    $region5: #{tpu_custom_call.1} parent=1 // pred_fallthru
      _
    // Predicated region
    $region6: #{tpu_custom_call.1} parent=1 // pred_check
      _
    $region7: #{tpu_custom_call.1} parent=1 // pred_check_branch
      %18 = sbr.rel (0) target = $region9
    $region8: #{tpu_custom_call.1} parent=1 // pred_region
      _
    $region9: #{tpu_custom_call.1} parent=1 // pred_fallthru
      _
    // Predicated region
    $region10: #{tpu_custom_call.1} parent=1 // pred_check
      _
    $region11: #{tpu_custom_call.1} parent=1 // pred_check_branch
      %20 = sbr.rel (0) target = $region13
    $region12: #{tpu_custom_call.1} parent=1 // pred_region
      _
    $region13: #{tpu_custom_call.1} parent=1 // pred_fallthru
      _
    // Predicated region
    $region14: #{tpu_custom_call.1} parent=1 // pred_check
      _
    $region15: #{tpu_custom_call.1} parent=1 // pred_check_branch
      %22 = sbr.rel (0) target = $region17
    $region16: #{tpu_custom_call.1} parent=1 // pred_region
      _
    $region17: #{tpu_custom_call.1} parent=1 // pred_fallthru
      _
    // Predicated region
    $region18: #{tpu_custom_call.1} parent=1 // pred_check
      _
    $region19: #{tpu_custom_call.1} parent=1 // pred_check_branch
      %24 = sbr.rel (0) target = $region21
    $region20: #{tpu_custom_call.1} parent=1 // pred_region
      _
    $region21: #{tpu_custom_call.1} parent=1 // pred_fallthru
      _
    // Predicated region
    $region22: #{tpu_custom_call.1} parent=1 // pred_check
      _
    $region23: #{tpu_custom_call.1} parent=1 // pred_check_branch
      %26 = sbr.rel (0) target = $region25
    $region24: #{tpu_custom_call.1} parent=1 // pred_region
      _
    $region25: #{tpu_custom_call.1} parent=1 // pred_fallthru
      _
    // Predicated region
    $region26: #{tpu_custom_call.1} parent=1 // pred_check
      _
    $region27: #{tpu_custom_call.1} parent=1 // pred_check_branch
      %28 = sbr.rel (0) target = $region29
    $region28: #{tpu_custom_call.1} parent=1 // pred_region
      _
    $region29: #{tpu_custom_call.1} parent=1 // pred_fallthru
      _
    %v29 = vld [vmem:[%s0] sm:$0xf]
    %v30 = vld [vmem:[%s1] sm:$0xff]
    %v31 = vld [vmem:[%s1 + $0x8] sm:$0xff]
    %v32 = vld [vmem:[%s1 + $0x10] sm:$0xff]
    %v33 = vld [vmem:[%s1 + $0x18] sm:$0xff]
    %v34 = vld [vmem:[%s2] sm:$0xff]
    %v35 = vld [vmem:[%s2 + $0x8] sm:$0xff]
    %v36 = vld [vmem:[%s2 + $0x10] sm:$0xff]
    %v37 = vld [vmem:[%s2 + $0x18] sm:$0xff]
    %39 = vset.pattern.permute.xlu0 0
    %40 = vperm.xlu0 %39, %v34
    %v41 = vpop.permute.xlu0 %40
    %44 = vset.pattern.permute.xlu0 0
    %45 = vperm.xlu0 %44, %v35
    %v46 = vpop.permute.xlu0 %45
    %49 = vset.pattern.permute.xlu0 0
    %50 = vperm.xlu0 %49, %v36
    %v51 = vpop.permute.xlu0 %50
    %54 = vset.pattern.permute.xlu0 0
    %55 = vperm.xlu0 %54, %v37
    %v56 = vpop.permute.xlu0 %55
    %vm58 = vcmask 31744
    %v60 = vsel %vm58, %v30, 0
    %v63 = vsel %vm58, %v31, 0
    %v66 = vsel %vm58, %v32, 0
    %v69 = vsel %vm58, %v33, 0
    %vm71 = vcmask 1043456
    %v73 = vsel %vm71, %v29, 0
    %75 = vmatprep.subr.mxu0 0.0
    %76 = vmatpush1.msra.mxu0 0.0
    %77 = vmatprep.subr.mxu0 0.0
    %78 = vmatpush1.msra.mxu0 0.0
    %79 = vmatprep.subr.mxu0 0.0
    %80 = vmatpush1.msra.mxu0 0.0
    %81 = vmatprep.subr.mxu0 0.0
    %82 = vmatpush1.msra.mxu0 0.0
    %83 = vmatprep.subr.mxu0 0.0
    %84 = vmatpush1.msra.mxu0 0.0
    %85 = vmatprep.subr.mxu0 0.0
    %86 = vmatpush1.msra.mxu0 0.0
    %87 = vmatprep.subr.mxu0 0.0
    %88 = vmatpush1.msra.mxu0 0.0
    %89 = vmatprep.subr.mxu0 0.0
    %90 = vmatpush1.msra.mxu0 0.0
    %91 = vmatprep.subr.mxu0 0.0
    %92 = vmatpush1.msra.mxu0 0.0
    %93 = vmatprep.subr.mxu0 0.0
    %94 = vmatpush1.msra.mxu0 0.0
    %95 = vmatprep.subr.mxu0 0.0
    %96 = vmatpush1.msra.mxu0 0.0
    %97 = vmatprep.subr.mxu0 0.0
    %98 = vmatpush1.msra.mxu0 0.0
    %99 = vmatprep.subr.mxu0 0.0
    %100 = vmatpush1.msra.mxu0 0.0
    %101 = vmatprep.subr.mxu0 0.0
    %102 = vmatpush1.msra.mxu0 0.0
    %103 = vmatprep.subr.mxu0 0.0
    %104 = vmatpush1.msra.mxu0 0.0
    %105 = vmatprep.subr.mxu0 0.0
    %106 = vmatpush1.msra.mxu0 %v73
    %107 = vmatprep.subr.mxu0 0.0
    %108 = vmatpush2.msra.mxu0 0.0
    %109 = vmatprep.subr.mxu0 0.0
    %110 = vmatpush2.msra.mxu0 0.0
    %111 = vmatprep.subr.mxu0 0.0
    %112 = vmatpush2.msra.mxu0 0.0
    %113 = vmatprep.subr.mxu0 0.0
    %114 = vmatpush2.msra.mxu0 0.0
    %115 = vmatprep.subr.mxu0 0.0
    %116 = vmatpush2.msra.mxu0 0.0
    %117 = vmatprep.subr.mxu0 0.0
    %118 = vmatpush2.msra.mxu0 0.0
    %119 = vmatprep.subr.mxu0 0.0
    %120 = vmatpush2.msra.mxu0 0.0
    %121 = vmatprep.subr.mxu0 0.0
    %122 = vmatpush2.msra.mxu0 0.0
    %123 = vmatprep.subr.mxu0 0.0
    %124 = vmatpush2.msra.mxu0 0.0
    %125 = vmatprep.subr.mxu0 0.0
    %126 = vmatpush2.msra.mxu0 0.0
    %127 = vmatprep.subr.mxu0 0.0
    %128 = vmatpush2.msra.mxu0 0.0
    %129 = vmatprep.subr.mxu0 0.0
    %130 = vmatpush2.msra.mxu0 0.0
    %131 = vmatprep.subr.mxu0 0.0
    %132 = vmatpush2.msra.mxu0 0.0
    %133 = vmatprep.subr.mxu0 0.0
    %134 = vmatpush2.msra.mxu0 0.0
    %135 = vmatprep.subr.mxu0 0.0
    %136 = vmatpush2.msra.mxu0 0.0
    %137 = vmatprep.subr.mxu0 0.0
    %138 = vmatpush2.msra.mxu0 0.0
    %139 = vmatprep.mubr.f32.mxu0 0.0
    %140 = vmatmul.mubr.f32.gmra.mxu0 %v60
    %v141 = vpop.f32.mrf.mxu0
    %v142 = vadd.f32 %v41, %v141
    %v143 = vpop.f32.mrf.mxu0
    %144 = vmatprep.mubr.f32.mxu0 0.0
    %145 = vmatmul.mubr.f32.gmra.mxu0 %v63
    %v146 = vpop.f32.mrf.mxu0
    %v147 = vadd.f32 %v46, %v146
    %v148 = vpop.f32.mrf.mxu0
    %149 = vmatprep.mubr.f32.mxu0 0.0
    %150 = vmatmul.mubr.f32.gmra.mxu0 %v66
    %v151 = vpop.f32.mrf.mxu0
    %v152 = vadd.f32 %v51, %v151
    %v153 = vpop.f32.mrf.mxu0
    %154 = vmatprep.mubr.f32.mxu0 0.0
    %155 = vmatmul.mubr.f32.gmra.mxu0 %v69
    %v156 = vpop.f32.mrf.mxu0
    %v157 = vadd.f32 %v56, %v156
    %v158 = vpop.f32.mrf.mxu0
    %159 = vdwg.mxu0
    %v160 = vmax.f32 %v142, 0.0
    %v161 = vmax.f32 %v147, 0.0
    %v162 = vmax.f32 %v152, 0.0
    %v163 = vmax.f32 %v157, 0.0
    %v164 = vld [vmem:[%s3] sm:$0xff]
    %v165 = vld [vmem:[%s3 + $0x8] sm:$0xff]
    %v166 = vld [vmem:[%s4] sm:$0xff]
    %v167 = vld [vmem:[%s4 + $0x8] sm:$0xff]
    %169 = vset.pattern.permute.xlu0 0
    %170 = vperm.xlu0 %169, %v166
    %v171 = vpop.permute.xlu0 %170
    %174 = vset.pattern.permute.xlu0 0
    %175 = vperm.xlu0 %174, %v167
    %v176 = vpop.permute.xlu0 %175
    %vm178 = vcmask 261120
    %v180 = vsel %vm178, %v164, 0
    %v183 = vsel %vm178, %v165, 0
    %185 = vmatprep.subr.mxu0 0.0
    %186 = vmatpush1.msra.mxu0 0.0
    %187 = vmatprep.subr.mxu0 0.0
    %188 = vmatpush1.msra.mxu0 0.0
    %189 = vmatprep.subr.mxu0 0.0
    %190 = vmatpush1.msra.mxu0 0.0
    %191 = vmatprep.subr.mxu0 0.0
    %192 = vmatpush1.msra.mxu0 0.0
    %193 = vmatprep.subr.mxu0 0.0
    %194 = vmatpush1.msra.mxu0 0.0
    %195 = vmatprep.subr.mxu0 0.0
    %196 = vmatpush1.msra.mxu0 0.0
    %197 = vmatprep.subr.mxu0 0.0
    %198 = vmatpush1.msra.mxu0 0.0
    %199 = vmatprep.subr.mxu0 0.0
    %200 = vmatpush1.msra.mxu0 0.0
    %201 = vmatprep.subr.mxu0 0.0
    %202 = vmatpush1.msra.mxu0 0.0
    %203 = vmatprep.subr.mxu0 0.0
    %204 = vmatpush1.msra.mxu0 0.0
    %205 = vmatprep.subr.mxu0 0.0
    %206 = vmatpush1.msra.mxu0 0.0
    %207 = vmatprep.subr.mxu0 0.0
    %208 = vmatpush1.msra.mxu0 0.0
    %209 = vmatprep.subr.mxu0 0.0
    %210 = vmatpush1.msra.mxu0 %v163
    %211 = vmatprep.subr.mxu0 0.0
    %212 = vmatpush1.msra.mxu0 %v162
    %213 = vmatprep.subr.mxu0 0.0
    %214 = vmatpush1.msra.mxu0 %v161
    %215 = vmatprep.subr.mxu0 0.0
    %216 = vmatpush1.msra.mxu0 %v160
    %217 = vmatprep.subr.mxu0 0.0
    %218 = vmatpush2.msra.mxu0 0.0
    %219 = vmatprep.subr.mxu0 0.0
    %220 = vmatpush2.msra.mxu0 0.0
    %221 = vmatprep.subr.mxu0 0.0
    %222 = vmatpush2.msra.mxu0 0.0
    %223 = vmatprep.subr.mxu0 0.0
    %224 = vmatpush2.msra.mxu0 0.0
    %225 = vmatprep.subr.mxu0 0.0
    %226 = vmatpush2.msra.mxu0 0.0
    %227 = vmatprep.subr.mxu0 0.0
    %228 = vmatpush2.msra.mxu0 0.0
    %229 = vmatprep.subr.mxu0 0.0
    %230 = vmatpush2.msra.mxu0 0.0
    %231 = vmatprep.subr.mxu0 0.0
    %232 = vmatpush2.msra.mxu0 0.0
    %233 = vmatprep.subr.mxu0 0.0
    %234 = vmatpush2.msra.mxu0 0.0
    %235 = vmatprep.subr.mxu0 0.0
    %236 = vmatpush2.msra.mxu0 0.0
    %237 = vmatprep.subr.mxu0 0.0
    %238 = vmatpush2.msra.mxu0 0.0
    %239 = vmatprep.subr.mxu0 0.0
    %240 = vmatpush2.msra.mxu0 0.0
    %241 = vmatprep.subr.mxu0 0.0
    %242 = vmatpush2.msra.mxu0 0.0
    %243 = vmatprep.subr.mxu0 0.0
    %244 = vmatpush2.msra.mxu0 0.0
    %245 = vmatprep.subr.mxu0 0.0
    %246 = vmatpush2.msra.mxu0 0.0
    %247 = vmatprep.subr.mxu0 0.0
    %248 = vmatpush2.msra.mxu0 0.0
    %249 = vmatprep.mubr.f32.mxu0 0.0
    %250 = vmatmul.mubr.f32.gmra.mxu0 %v180
    %v251 = vpop.f32.mrf.mxu0
    %v252 = vadd.f32 %v171, %v251
    %v253 = vpop.f32.mrf.mxu0
    %254 = vmatprep.mubr.f32.mxu0 0.0
    %255 = vmatmul.mubr.f32.gmra.mxu0 %v183
    %v256 = vpop.f32.mrf.mxu0
    %v257 = vadd.f32 %v176, %v256
    %v258 = vpop.f32.mrf.mxu0
    %259 = vdwg.mxu0
    %v260 = vmax.f32 %v252, 0.0
    %v261 = vmax.f32 %v257, 0.0
    %v262 = vld [vmem:[%s5] sm:$0x1]
    %v263 = vld [vmem:[#allocation2] sm:$0x1]
    %265 = vset.pattern.permute.xlu0 0
    %266 = vperm.xlu0 %265, %v263
    %v267 = vpop.permute.xlu0 %266
    %v269 = vlaneseq
    %v270 = vshrl.u32 %v269, 7
    %v271 = vsub.s32 0, %v270
    %v272 = vrot.slane %v267, %v271
    %vm273 = vcmask 130048
    %v275 = vsel %vm273, %v262, 0
    %277 = vmatprep.subr.mxu0 0.0
    %278 = vmatpush1.msra.mxu0 0.0
    %279 = vmatprep.subr.mxu0 0.0
    %280 = vmatpush1.msra.mxu0 0.0
    %281 = vmatprep.subr.mxu0 0.0
    %282 = vmatpush1.msra.mxu0 0.0
    %283 = vmatprep.subr.mxu0 0.0
    %284 = vmatpush1.msra.mxu0 0.0
    %285 = vmatprep.subr.mxu0 0.0
    %286 = vmatpush1.msra.mxu0 0.0
    %287 = vmatprep.subr.mxu0 0.0
    %288 = vmatpush1.msra.mxu0 0.0
    %289 = vmatprep.subr.mxu0 0.0
    %290 = vmatpush1.msra.mxu0 0.0
    %291 = vmatprep.subr.mxu0 0.0
    %292 = vmatpush1.msra.mxu0 0.0
    %293 = vmatprep.subr.mxu0 0.0
    %294 = vmatpush1.msra.mxu0 0.0
    %295 = vmatprep.subr.mxu0 0.0
    %296 = vmatpush1.msra.mxu0 0.0
    %297 = vmatprep.subr.mxu0 0.0
    %298 = vmatpush1.msra.mxu0 0.0
    %299 = vmatprep.subr.mxu0 0.0
    %300 = vmatpush1.msra.mxu0 0.0
    %301 = vmatprep.subr.mxu0 0.0
    %302 = vmatpush1.msra.mxu0 0.0
    %303 = vmatprep.subr.mxu0 0.0
    %304 = vmatpush1.msra.mxu0 0.0
    %305 = vmatprep.subr.mxu0 0.0
    %306 = vmatpush1.msra.mxu0 %v261
    %307 = vmatprep.subr.mxu0 0.0
    %308 = vmatpush1.msra.mxu0 %v260
    %309 = vmatprep.subr.mxu0 0.0
    %310 = vmatpush2.msra.mxu0 0.0
    %311 = vmatprep.subr.mxu0 0.0
    %312 = vmatpush2.msra.mxu0 0.0
    %313 = vmatprep.subr.mxu0 0.0
    %314 = vmatpush2.msra.mxu0 0.0
    %315 = vmatprep.subr.mxu0 0.0
    %316 = vmatpush2.msra.mxu0 0.0
    %317 = vmatprep.subr.mxu0 0.0
    %318 = vmatpush2.msra.mxu0 0.0
    %319 = vmatprep.subr.mxu0 0.0
    %320 = vmatpush2.msra.mxu0 0.0
    %321 = vmatprep.subr.mxu0 0.0
    %322 = vmatpush2.msra.mxu0 0.0
    %323 = vmatprep.subr.mxu0 0.0
    %324 = vmatpush2.msra.mxu0 0.0
    %325 = vmatprep.subr.mxu0 0.0
    %326 = vmatpush2.msra.mxu0 0.0
    %327 = vmatprep.subr.mxu0 0.0
    %328 = vmatpush2.msra.mxu0 0.0
    %329 = vmatprep.subr.mxu0 0.0
    %330 = vmatpush2.msra.mxu0 0.0
    %331 = vmatprep.subr.mxu0 0.0
    %332 = vmatpush2.msra.mxu0 0.0
    %333 = vmatprep.subr.mxu0 0.0
    %334 = vmatpush2.msra.mxu0 0.0
    %335 = vmatprep.subr.mxu0 0.0
    %336 = vmatpush2.msra.mxu0 0.0
    %337 = vmatprep.subr.mxu0 0.0
    %338 = vmatpush2.msra.mxu0 0.0
    %339 = vmatprep.subr.mxu0 0.0
    %340 = vmatpush2.msra.mxu0 0.0
    %341 = vmatprep.mubr.f32.mxu0 0.0
    %342 = vmatmul.mubr.f32.gmra.mxu0 %v275
    %v343 = vpop.f32.mrf.mxu0
    %v344 = vadd.f32 %v272, %v343
    %v345 = vpop.f32.mrf.mxu0
    %346 = vdwg.mxu0
    %v347 = vsub.f32 0.0, %v344
    %v348 = vmul.f32 %v347, 1.442695
    %v349 = vpow.pop %v348
    %v350 = vadd.f32 %v349, 1.0
    %v351 = vrcp.pop %v350
    %v352 = vmul.f32 1.0, %v351
    %353 = vst [vmem:[#allocation3] sm:$0x1] %v352
    %v354 = vsub.f32 1.0, %v352
    %355 = vst [vmem:[#allocation3 + $0x1] sm:$0x1] %v354
    // Predicated region
    $region30: #{tpu_custom_call.1} parent=1 // pred_check
      _
    $region31: #{tpu_custom_call.1} parent=1 // pred_check_branch
      %357 = sbr.rel (0) target = $region33
    $region32: #{tpu_custom_call.1} parent=1 // pred_region
      %s359 = ssub.s32 32, 32
      %360 = vsyncadd [#allocation4], %s359
      %s362 = sshll.u32 [#allocation3], 4
      %s363 = int_to_ptr.vmem [resolvable:$true] %s362
      %365 = dma.vmem_to_hbm [thread:$0]  %s363, 32, %s7, [#allocation4]
    $region33: #{tpu_custom_call.1} parent=1 // pred_fallthru
      _
    // Predicated region
    $region34: #{tpu_custom_call.1} parent=1 // pred_check
      _
    $region35: #{tpu_custom_call.1} parent=1 // pred_check_branch
      %367 = sbr.rel (0) target = $region37
    $region36: #{tpu_custom_call.1} parent=1 // pred_region
      %368 = dma.done [#allocation4], 32
    $region37: #{tpu_custom_call.1} parent=1 // pred_fallthru
      _
    %369 = vsyncpa [#allocation4], 1

</llo_original>
